<compile_context>
chip_gen: v7x
topology: tpu7x:2x2x1
jax: 0.10.0
libtpu: 0.0.40
codegen_flags: <defaults>
</compile_context>

<pallas_src>
import functools

import jax
import jax.numpy as jnp
from jax.experimental import pallas as pl
from jax.experimental.pallas import tpu as pltpu


# -----------------------------------------------------------------------------
# Fused kernel: conv-as-matmul + bias + ReLU + global pool + linear head
# -----------------------------------------------------------------------------
def fused_kernel(xT_ref, wT_ref, bcol_ref, fcwT_ref, fcbcol_ref, o_ref, *, bb):
    """One grid step processes `bb` images end-to-end.

    xT_ref:     (bb, K, HW)    im2col patches, HW on the lane dim
    wT_ref:     (Cout, K)      conv weight, transposed (resident across steps)
    bcol_ref:   (Cout, 1)      conv bias (broadcast over HW lanes)
    fcwT_ref:   (NCPAD, Cout)  head weight^T, scaled by 1/HW, lane-padded
    fcbcol_ref: (NCPAD, 1)     head bias, padded
    o_ref:      (1, NCPAD, bb) transposed logits block
    """
    cols = []
    for i in range(bb):  # bb is a small static constant (1 or 2) -> unrolled
        x_i = xT_ref[i]                                                   # (K, HW)
        y = jnp.dot(wT_ref[...], x_i,
                    preferred_element_type=jnp.float32)                   # (Cout, HW)
        y = jnp.maximum(y + bcol_ref[...], 0.0)                           # bias + ReLU
        cols.append(jnp.sum(y, axis=1, keepdims=True))                    # (Cout, 1) sum-pool
    pooled = cols[0] if bb == 1 else jnp.concatenate(cols, axis=1)        # (Cout, bb)
    logits_t = (
        jnp.dot(fcwT_ref[...], pooled, preferred_element_type=jnp.float32)
        + fcbcol_ref[...]
    )                                                                     # (NCPAD, bb)
    o_ref[0] = logits_t


# -----------------------------------------------------------------------------
# Wrapper (glue: padding, im2col in (K, HW) layout, weight prep)
# -----------------------------------------------------------------------------
def _num_batch_blocks(batch):
    """2 batch blocks on multi-TensorCore chips (so both TCs do work), else 1."""
    kind = ""
    try:
        kind = (jax.devices()[0].device_kind or "").lower()
    except Exception:
        pass
    multi_tc = any(tag in kind for tag in ("v7", "v4", "v5p"))
    if multi_tc and batch >= 2 and batch % 2 == 0:
        return 2
    return 1


def brainwrapper_forward(x_nchw, conv_w, conv_b, fc_w, fc_b):
    """conv_w: (KH, KW, Cin, Cout); conv_b: (Cout,); fc_w: (Cout, NC); fc_b: (NC,)."""
    B, Cin, H, W = x_nchw.shape
    KH, KW, _, Cout = conv_w.shape
    NC = fc_w.shape[1]
    K = KH * KW * Cin
    HW = H * W
    NCPAD = -(-NC // 128) * 128  # pad logits width to a full lane group

    # --- im2col directly in (B, K, HW) layout (NCHW needs no channel transpose)
    x = x_nchw.astype(jnp.float32)
    x_pad = jnp.pad(x, ((0, 0), (0, 0), (1, 1), (1, 1)))  # conv padding=1
    slabs = [
        x_pad[:, :, kh:kh + H, kw:kw + W].reshape(B, Cin, HW)
        for kh in range(KH) for kw in range(KW)
    ]
    patches_T = jnp.concatenate(slabs, axis=1)             # (B, K, HW), order (kh,kw,cin)

    # --- parameters in kernel layout
    wT = conv_w.reshape(K, Cout).astype(jnp.float32).T      # (Cout, K)
    b_col = conv_b.reshape(Cout, 1).astype(jnp.float32)     # (Cout, 1)
    fcwT_s = (fc_w.astype(jnp.float32) / float(HW)).T       # (NC, Cout), 1/HW folded in
    fcwT_s = jnp.pad(fcwT_s, ((0, NCPAD - NC), (0, 0)))     # (NCPAD, Cout)
    fcb_col = jnp.pad(fc_b.astype(jnp.float32).reshape(NC, 1),
                      ((0, NCPAD - NC), (0, 0)))            # (NCPAD, 1)

    G = _num_batch_blocks(B)   # 1 on single-TC (v5e/v6e), 2 on multi-TC (v7x/...)
    BB = B // G

    out_t = pl.pallas_call(
        functools.partial(fused_kernel, bb=BB),
        out_shape=jax.ShapeDtypeStruct((G, NCPAD, BB), jnp.float32),
        grid=(G,),
        in_specs=[
            pl.BlockSpec((BB, K, HW), lambda g: (g, 0, 0)),
            pl.BlockSpec((Cout, K), lambda g: (0, 0)),      # resident across steps
            pl.BlockSpec((Cout, 1), lambda g: (0, 0)),
            pl.BlockSpec((NCPAD, Cout), lambda g: (0, 0)),
            pl.BlockSpec((NCPAD, 1), lambda g: (0, 0)),
        ],
        out_specs=pl.BlockSpec((1, NCPAD, BB), lambda g: (g, 0, 0)),
        compiler_params=pltpu.CompilerParams(
            dimension_semantics=("parallel",)
        ),
    )(patches_T, wT, b_col, fcwT_s, fcb_col)

    # (G, NCPAD, BB) -> (B, NCPAD) -> slice real classes
    logits = jnp.transpose(out_t, (0, 2, 1)).reshape(B, NCPAD)[:, :NC]
    return logits


# -----------------------------------------------------------------------------
# Pure-JAX reference for a sanity check
# -----------------------------------------------------------------------------
def reference_forward(x_nchw, conv_w, conv_b, fc_w, fc_b):
    x = jnp.transpose(x_nchw, (0, 2, 3, 1)).astype(jnp.float32)  # NHWC
    y = jax.lax.conv_general_dilated(
        x, conv_w.astype(jnp.float32),
        window_strides=(1, 1), padding="SAME",
        dimension_numbers=("NHWC", "HWIO", "NHWC"),
    ) + conv_b[None, None, None, :]
    y = jnp.maximum(y, 0.0)
    feat = jnp.mean(y, axis=(1, 2))                 # global avg pool
    return feat @ fc_w.astype(jnp.float32) + fc_b   # linear head


# -----------------------------------------------------------------------------
# Main
# -----------------------------------------------------------------------------
if __name__ == "__main__":
    B, Cin, H, W = 2, 4, 16, 16
    Cout, NC = 32, 10

    key = jax.random.PRNGKey(0)
    kx, kw1, kb1, kw2, kb2 = jax.random.split(key, 5)

    x = jax.random.normal(kx, (B, Cin, H, W), dtype=jnp.float32)
    conv_w = 0.1 * jax.random.normal(kw1, (3, 3, Cin, Cout), dtype=jnp.float32)
    conv_b = 0.1 * jax.random.normal(kb1, (Cout,), dtype=jnp.float32)
    fc_w = 0.1 * jax.random.normal(kw2, (Cout, NC), dtype=jnp.float32)
    fc_b = 0.1 * jax.random.normal(kb2, (NC,), dtype=jnp.float32)

    fwd = jax.jit(brainwrapper_forward)
    out = fwd(x, conv_w, conv_b, fc_w, fc_b)
    out = jax.block_until_ready(out)

    ref = reference_forward(x, conv_w, conv_b, fc_w, fc_b)
    assert out.shape == (B, NC)
    assert jnp.allclose(out, ref, atol=1e-4, rtol=1e-4), "mismatch vs reference"

    print("KERNEL_OK")
</pallas_src>

<mosaic_0001>
module attributes {stable_mosaic.version = 11 : i64} {
  func.func @fused_kernel(%arg0: i32, %arg1: memref<2x36x256xf32, #tpu.memory_space<vmem>>, %arg2: memref<32x36xf32, #tpu.memory_space<vmem>>, %arg3: memref<32x1xf32, #tpu.memory_space<vmem>>, %arg4: memref<128x32xf32, #tpu.memory_space<vmem>>, %arg5: memref<128x1xf32, #tpu.memory_space<vmem>>, %arg6: memref<1x128x2xf32, #tpu.memory_space<vmem>>) attributes {dimension_semantics = [#tpu.dimension_semantics<parallel>], iteration_bounds = array<i64: 1>, scalar_prefetch = 0 : i64, scratch_operands = 0 : i64, tpu.core_type = #tpu.core_type<tc>, window_params = [{transform_indices = @transform_0, window_bounds = array<i64: 2, 36, 256>}, {pipeline_mode = #tpu.pipeline_mode<synchronous>, transform_indices = @transform_1, window_bounds = array<i64: 32, 36>}, {pipeline_mode = #tpu.pipeline_mode<synchronous>, transform_indices = @transform_2, window_bounds = array<i64: 32, 1>}, {pipeline_mode = #tpu.pipeline_mode<synchronous>, transform_indices = @transform_3, window_bounds = array<i64: 128, 32>}, {pipeline_mode = #tpu.pipeline_mode<synchronous>, transform_indices = @transform_4, window_bounds = array<i64: 128, 1>}, {transform_indices = @transform_5, window_bounds = array<i64: 1, 128, 2>}]} {
    %c0 = arith.constant 0 : index
    %c0_0 = arith.constant 0 : index
    %c0_1 = arith.constant 0 : index
    %0 = vector.load %arg1[%c0, %c0_0, %c0_1] : memref<2x36x256xf32, #tpu.memory_space<vmem>>, vector<1x36x256xf32>
    %1 = vector.shape_cast %0 : vector<1x36x256xf32> to vector<36x256xf32>
    %c0_2 = arith.constant 0 : index
    %c0_3 = arith.constant 0 : index
    %2 = vector.load %arg2[%c0_2, %c0_3] : memref<32x36xf32, #tpu.memory_space<vmem>>, vector<32x36xf32>
    %cst = arith.constant dense<0.000000e+00> : vector<32x256xf32>
    %3 = tpu.matmul %2, %1, %cst {dimension_numbers = #tpu.dot_dimension_numbers<[1], [0], [0], [1], [0, 0, 1, 1], [], []>} : vector<32x36xf32>, vector<36x256xf32>, vector<32x256xf32> -> vector<32x256xf32>
    %c0_4 = arith.constant 0 : index
    %c0_5 = arith.constant 0 : index
    %4 = vector.load %arg3[%c0_4, %c0_5] : memref<32x1xf32, #tpu.memory_space<vmem>>, vector<32x1xf32>
    %5 = vector.broadcast %4 : vector<32x1xf32> to vector<32x256xf32>
    %6 = arith.addf %3, %5 : vector<32x256xf32>
    %cst_6 = arith.constant 0.000000e+00 : f32
    %7 = vector.broadcast %cst_6 : f32 to vector<32x256xf32>
    %8 = arith.maximumf %6, %7 : vector<32x256xf32>
    %cst_7 = arith.constant dense<0.000000e+00> : vector<32xf32>
    %9 = vector.multi_reduction <add>, %8, %cst_7 [1] : vector<32x256xf32> to vector<32xf32>
    %10 = vector.shape_cast %9 : vector<32xf32> to vector<32x1xf32>
    %c1 = arith.constant 1 : index
    %c0_8 = arith.constant 0 : index
    %c0_9 = arith.constant 0 : index
    %11 = vector.load %arg1[%c1, %c0_8, %c0_9] : memref<2x36x256xf32, #tpu.memory_space<vmem>>, vector<1x36x256xf32>
    %12 = vector.shape_cast %11 : vector<1x36x256xf32> to vector<36x256xf32>
    %c0_10 = arith.constant 0 : index
    %c0_11 = arith.constant 0 : index
    %13 = vector.load %arg2[%c0_10, %c0_11] : memref<32x36xf32, #tpu.memory_space<vmem>>, vector<32x36xf32>
    %cst_12 = arith.constant dense<0.000000e+00> : vector<32x256xf32>
    %14 = tpu.matmul %13, %12, %cst_12 {dimension_numbers = #tpu.dot_dimension_numbers<[1], [0], [0], [1], [0, 0, 1, 1], [], []>} : vector<32x36xf32>, vector<36x256xf32>, vector<32x256xf32> -> vector<32x256xf32>
    %c0_13 = arith.constant 0 : index
    %c0_14 = arith.constant 0 : index
    %15 = vector.load %arg3[%c0_13, %c0_14] : memref<32x1xf32, #tpu.memory_space<vmem>>, vector<32x1xf32>
    %16 = vector.broadcast %15 : vector<32x1xf32> to vector<32x256xf32>
    %17 = arith.addf %14, %16 : vector<32x256xf32>
    %cst_15 = arith.constant 0.000000e+00 : f32
    %18 = vector.broadcast %cst_15 : f32 to vector<32x256xf32>
    %19 = arith.maximumf %17, %18 : vector<32x256xf32>
    %cst_16 = arith.constant dense<0.000000e+00> : vector<32xf32>
    %20 = vector.multi_reduction <add>, %19, %cst_16 [1] : vector<32x256xf32> to vector<32xf32>
    %21 = vector.shape_cast %20 : vector<32xf32> to vector<32x1xf32>
    %22 = tpu.concatenate %10, %21 in 1 : vector<32x1xf32>, vector<32x1xf32> -> vector<32x2xf32>
    %c0_17 = arith.constant 0 : index
    %c0_18 = arith.constant 0 : index
    %23 = vector.load %arg4[%c0_17, %c0_18] : memref<128x32xf32, #tpu.memory_space<vmem>>, vector<128x32xf32>
    %cst_19 = arith.constant dense<0.000000e+00> : vector<128x2xf32>
    %24 = tpu.matmul %23, %22, %cst_19 {dimension_numbers = #tpu.dot_dimension_numbers<[1], [0], [0], [1], [0, 0, 1, 1], [], []>} : vector<128x32xf32>, vector<32x2xf32>, vector<128x2xf32> -> vector<128x2xf32>
    %c0_20 = arith.constant 0 : index
    %c0_21 = arith.constant 0 : index
    %25 = vector.load %arg5[%c0_20, %c0_21] : memref<128x1xf32, #tpu.memory_space<vmem>>, vector<128x1xf32>
    %26 = vector.broadcast %25 : vector<128x1xf32> to vector<128x2xf32>
    %27 = arith.addf %24, %26 : vector<128x2xf32>
    %c0_22 = arith.constant 0 : index
    %c0_23 = arith.constant 0 : index
    %c0_24 = arith.constant 0 : index
    %28 = vector.load %arg6[%c0_22, %c0_23, %c0_24] : memref<1x128x2xf32, #tpu.memory_space<vmem>>, vector<1x128x2xf32>
    %29 = vector.shape_cast %28 : vector<1x128x2xf32> to vector<128x2xf32>
    %30 = vector.shape_cast %27 : vector<128x2xf32> to vector<1x128x2xf32>
    tpu.vector_store %arg6[%c0_22, %c0_23, %c0_24], %30 {strides = array<i32>} : memref<1x128x2xf32, #tpu.memory_space<vmem>>, vector<1x128x2xf32>,
    return
  }
  func.func @transform_0(%arg0: i32) -> (i32, i32, i32) {
    %c0_i32 = arith.constant 0 : i32
    %c0_i32_0 = arith.constant 0 : i32
    %c0_i32_1 = arith.constant 0 : i32
    return %arg0, %c0_i32, %c0_i32_0 : i32, i32, i32
  }
  func.func @transform_1(%arg0: i32) -> (i32, i32) {
    %c0_i32 = arith.constant 0 : i32
    %c0_i32_0 = arith.constant 0 : i32
    %c0_i32_1 = arith.constant 0 : i32
    return %c0_i32, %c0_i32_0 : i32, i32
  }
  func.func @transform_2(%arg0: i32) -> (i32, i32) {
    %c0_i32 = arith.constant 0 : i32
    %c0_i32_0 = arith.constant 0 : i32
    %c0_i32_1 = arith.constant 0 : i32
    return %c0_i32, %c0_i32_0 : i32, i32
  }
  func.func @transform_3(%arg0: i32) -> (i32, i32) {
    %c0_i32 = arith.constant 0 : i32
    %c0_i32_0 = arith.constant 0 : i32
    %c0_i32_1 = arith.constant 0 : i32
    return %c0_i32, %c0_i32_0 : i32, i32
  }
  func.func @transform_4(%arg0: i32) -> (i32, i32) {
    %c0_i32 = arith.constant 0 : i32
    %c0_i32_0 = arith.constant 0 : i32
    %c0_i32_1 = arith.constant 0 : i32
    return %c0_i32, %c0_i32_0 : i32, i32
  }
  func.func @transform_5(%arg0: i32) -> (i32, i32, i32) {
    %c0_i32 = arith.constant 0 : i32
    %c0_i32_0 = arith.constant 0 : i32
    %c0_i32_1 = arith.constant 0 : i32
    return %arg0, %c0_i32, %c0_i32_0 : i32, i32, i32
  }
}

</mosaic_0001>

<llo_original>
// kernel: brainwrapper_forward.1
$region0: #{brainwrapper_forward.1}
  #allocation0 [shape = 'u32[]', space=smem, size = 0x4, offset = 0x4, fixed_abs, tag = 'smem constant byte address 0x4 - core index']
  #allocation1 [shape = 'u32[144,128]{1,0:T(1,128)}', space=vmem, size = 0x12000, scoped, tag = 'internal scratch']
  %s0 = inlined_call_operand.vmem [shape: f32[2,36,256], index: 0, kind: input, shape index: {}]
  %s1 = inlined_call_operand.vmem [shape: f32[32,36], index: 1, kind: input, shape index: {}]
  %s2 = inlined_call_operand.vmem [shape: f32[32,1], index: 2, kind: input, shape index: {}]
  %s3 = inlined_call_operand.vmem [shape: f32[128,32], index: 3, kind: input, shape index: {}]
  %s4 = inlined_call_operand.vmem [shape: f32[128,1], index: 4, kind: input, shape index: {}]
  %s5 = inlined_call_operand.vmem [shape: f32[1,128,2], index: 5, kind: output, shape index: {}]
  %s6 = sld [smem:[#allocation0]]
  $region30: #{brainwrapper_forward.1} parent=0
    _
  %s8 = ssub.s32 1, %s6
  %s9 = scalar_select 0, %s8, %s6
  // Predicated region
  $region2: #{brainwrapper_forward.1} parent=0 // pred_check
    _
  $region3: #{brainwrapper_forward.1} parent=0 // pred_check_branch
    %11 = sbr.rel (0) target = $region5
  $region4: #{brainwrapper_forward.1} parent=0 // pred_region
    _
  $region5: #{brainwrapper_forward.1} parent=0 // pred_fallthru
    _
  // Predicated region
  $region6: #{brainwrapper_forward.1} parent=0 // pred_check
    _
  $region7: #{brainwrapper_forward.1} parent=0 // pred_check_branch
    %13 = sbr.rel (0) target = $region9
  $region8: #{brainwrapper_forward.1} parent=0 // pred_region
    _
  $region9: #{brainwrapper_forward.1} parent=0 // pred_fallthru
    _
  // Predicated region
  $region10: #{brainwrapper_forward.1} parent=0 // pred_check
    _
  $region11: #{brainwrapper_forward.1} parent=0 // pred_check_branch
    %15 = sbr.rel (0) target = $region13
  $region12: #{brainwrapper_forward.1} parent=0 // pred_region
    _
  $region13: #{brainwrapper_forward.1} parent=0 // pred_fallthru
    _
  // Predicated region
  $region14: #{brainwrapper_forward.1} parent=0 // pred_check
    _
  $region15: #{brainwrapper_forward.1} parent=0 // pred_check_branch
    %17 = sbr.rel (0) target = $region17
  $region16: #{brainwrapper_forward.1} parent=0 // pred_region
    _
  $region17: #{brainwrapper_forward.1} parent=0 // pred_fallthru
    _
  // Predicated region
  $region18: #{brainwrapper_forward.1} parent=0 // pred_check
    _
  $region19: #{brainwrapper_forward.1} parent=0 // pred_check_branch
    %19 = sbr.rel (0) target = $region21
  $region20: #{brainwrapper_forward.1} parent=0 // pred_region
    _
  $region21: #{brainwrapper_forward.1} parent=0 // pred_fallthru
    _
  %v20 = vld [vmem:[%s0] sm:$0xff]
  %v21 = vld [vmem:[%s0 + $0x8] sm:$0xff]
  %v22 = vld [vmem:[%s0 + $0x10] sm:$0xff]
  %v23 = vld [vmem:[%s0 + $0x18] sm:$0xff]
  %v24 = vld [vmem:[%s0 + $0x20] sm:$0xff]
  %v25 = vld [vmem:[%s0 + $0x28] sm:$0xff]
  %v26 = vld [vmem:[%s0 + $0x30] sm:$0xff]
  %v27 = vld [vmem:[%s0 + $0x38] sm:$0xff]
  %v28 = vld [vmem:[%s0 + $0x40] sm:$0xf]
  %v29 = vld [vmem:[%s0 + $0x48] sm:$0xf]
  %v30 = vld [vmem:[%s1] sm:$0xff]
  %v31 = vld [vmem:[%s1 + $0x8] sm:$0xff]
  %v32 = vld [vmem:[%s1 + $0x10] sm:$0xff]
  %v33 = vld [vmem:[%s1 + $0x18] sm:$0xff]
  %v34 = vld [vmem:[%s2] sm:$0xff]
  %v35 = vld [vmem:[%s2 + $0x8] sm:$0xff]
  %v36 = vld [vmem:[%s2 + $0x10] sm:$0xff]
  %v37 = vld [vmem:[%s2 + $0x18] sm:$0xff]
  %39 = vset.pattern.permute.xlu0 0
  %40 = vperm.xlu0 %39, %v34
  %v41 = vpop.permute.xlu0 %40
  %44 = vset.pattern.permute.xlu0 0
  %45 = vperm.xlu0 %44, %v35
  %v46 = vpop.permute.xlu0 %45
  %49 = vset.pattern.permute.xlu0 0
  %50 = vperm.xlu0 %49, %v36
  %v51 = vpop.permute.xlu0 %50
  %54 = vset.pattern.permute.xlu0 0
  %55 = vperm.xlu0 %54, %v37
  %v56 = vpop.permute.xlu0 %55
  %vm58 = vcmask 293888
  %v60 = vsel %vm58, %v30, 0
  %v63 = vsel %vm58, %v31, 0
  %v66 = vsel %vm58, %v32, 0
  %v69 = vsel %vm58, %v33, 0
  %vm71 = vcmask 1043456
  %v73 = vsel %vm71, %v28, 0
  %v76 = vsel %vm71, %v29, 0
  %78 = vmatprep.subr.mxu0 %v21
  %79 = vmatpush1.msra.mxu0 %v20
  %80 = vmatprep.subr.mxu0 %v23
  %81 = vmatpush1.msra.mxu0 %v22
  %82 = vmatprep.subr.mxu0 %v25
  %83 = vmatpush1.msra.mxu0 %v24
  %84 = vmatprep.subr.mxu0 %v27
  %85 = vmatpush1.msra.mxu0 %v26
  %86 = vmatprep.subr.mxu0 %v76
  %87 = vmatpush1.msra.mxu0 %v73
  %88 = vmatprep.subr.mxu0 0.0
  %89 = vmatpush1.msra.mxu0 0.0
  %90 = vmatprep.subr.mxu0 0.0
  %91 = vmatpush1.msra.mxu0 0.0
  %92 = vmatprep.subr.mxu0 0.0
  %93 = vmatpush1.msra.mxu0 0.0
  %94 = vmatprep.subr.mxu0 0.0
  %95 = vmatpush1.msra.mxu0 0.0
  %96 = vmatprep.subr.mxu0 0.0
  %97 = vmatpush1.msra.mxu0 0.0
  %98 = vmatprep.subr.mxu0 0.0
  %99 = vmatpush1.msra.mxu0 0.0
  %100 = vmatprep.subr.mxu0 0.0
  %101 = vmatpush1.msra.mxu0 0.0
  %102 = vmatprep.subr.mxu0 0.0
  %103 = vmatpush1.msra.mxu0 0.0
  %104 = vmatprep.subr.mxu0 0.0
  %105 = vmatpush1.msra.mxu0 0.0
  %106 = vmatprep.subr.mxu0 0.0
  %107 = vmatpush1.msra.mxu0 0.0
  %108 = vmatprep.subr.mxu0 0.0
  %109 = vmatpush1.msra.mxu0 0.0
  %110 = vmatprep.subr.mxu0 0.0
  %111 = vmatpush1.msra.mxu0 0.0
  %112 = vmatprep.subr.mxu0 0.0
  %113 = vmatpush1.msra.mxu0 0.0
  %114 = vmatprep.subr.mxu0 0.0
  %115 = vmatpush1.msra.mxu0 0.0
  %116 = vmatprep.subr.mxu0 0.0
  %117 = vmatpush1.msra.mxu0 0.0
  %118 = vmatprep.subr.mxu0 0.0
  %119 = vmatpush1.msra.mxu0 0.0
  %120 = vmatprep.subr.mxu0 0.0
  %121 = vmatpush1.msra.mxu0 0.0
  %122 = vmatprep.subr.mxu0 0.0
  %123 = vmatpush1.msra.mxu0 0.0
  %124 = vmatprep.subr.mxu0 0.0
  %125 = vmatpush1.msra.mxu0 0.0
  %126 = vmatprep.subr.mxu0 0.0
  %127 = vmatpush1.msra.mxu0 0.0
  %128 = vmatprep.subr.mxu0 0.0
  %129 = vmatpush1.msra.mxu0 0.0
  %130 = vmatprep.subr.mxu0 0.0
  %131 = vmatpush1.msra.mxu0 0.0
  %132 = vmatprep.subr.mxu0 0.0
  %133 = vmatpush1.msra.mxu0 0.0
  %134 = vmatprep.subr.mxu0 0.0
  %135 = vmatpush1.msra.mxu0 0.0
  %136 = vmatprep.subr.mxu0 0.0
  %137 = vmatpush1.msra.mxu0 0.0
  %138 = vmatprep.subr.mxu0 0.0
  %139 = vmatpush1.msra.mxu0 0.0
  %140 = vmatprep.subr.mxu0 0.0
  %141 = vmatpush1.msra.mxu0 0.0
  %142 = vmatprep.mubr.f32.mxu0 0.0
  %143 = vmatmul.mubr.f32.gmra.mrb[0].mxu0 %v60
  %v144 = vpop.f32.mrb[0].mxu0
  %v145 = vadd.f32 %v41, %v144
  %v146 = vpop.f32.mrb[0].mxu0
  %v147 = vadd.f32 %v41, %v146
  %148 = vmatprep.mubr.f32.mxu0 0.0
  %149 = vmatmul.mubr.f32.gmra.mrb[0].mxu0 %v63
  %v150 = vpop.f32.mrb[0].mxu0
  %v151 = vadd.f32 %v46, %v150
  %v152 = vpop.f32.mrb[0].mxu0
  %v153 = vadd.f32 %v46, %v152
  %154 = vmatprep.mubr.f32.mxu0 0.0
  %155 = vmatmul.mubr.f32.gmra.mrb[0].mxu0 %v66
  %v156 = vpop.f32.mrb[0].mxu0
  %v157 = vadd.f32 %v51, %v156
  %v158 = vpop.f32.mrb[0].mxu0
  %v159 = vadd.f32 %v51, %v158
  %160 = vmatprep.mubr.f32.mxu0 0.0
  %161 = vmatmul.mubr.f32.gmra.mrb[0].mxu0 %v69
  %v162 = vpop.f32.mrb[0].mxu0
  %v163 = vadd.f32 %v56, %v162
  %v164 = vpop.f32.mrb[0].mxu0
  %v165 = vadd.f32 %v56, %v164
  %166 = vdwg.mxu0
  %v167 = vmax.f32 %v145, 0.0
  %v168 = vmax.f32 %v147, 0.0
  %v169 = vmax.f32 %v151, 0.0
  %v170 = vmax.f32 %v153, 0.0
  %v171 = vmax.f32 %v157, 0.0
  %v172 = vmax.f32 %v159, 0.0
  %v173 = vmax.f32 %v163, 0.0
  %v174 = vmax.f32 %v165, 0.0
  %v175 = vadd.f32 %v167, %v168
  %176 = vadd.xlane.f32.xlu0 %v175
  %v177 = vpop.xlane.xlu0 %176
  %v178 = vadd.f32 %v169, %v170
  %179 = vadd.xlane.f32.xlu0 %v178
  %v180 = vpop.xlane.xlu0 %179
  %v181 = vadd.f32 %v171, %v172
  %182 = vadd.xlane.f32.xlu0 %v181
  %v183 = vpop.xlane.xlu0 %182
  %v184 = vadd.f32 %v173, %v174
  %185 = vadd.xlane.f32.xlu0 %v184
  %v186 = vpop.xlane.xlu0 %185
  %s187 = scalar_lea.vmem %s0, 80
  %v188 = vld [vmem:[%s187] sm:$0xff]
  %v189 = vld [vmem:[%s187 + $0x8] sm:$0xff]
  %v190 = vld [vmem:[%s187 + $0x10] sm:$0xff]
  %v191 = vld [vmem:[%s187 + $0x18] sm:$0xff]
  %v192 = vld [vmem:[%s187 + $0x20] sm:$0xff]
  %v193 = vld [vmem:[%s187 + $0x28] sm:$0xff]
  %v194 = vld [vmem:[%s187 + $0x30] sm:$0xff]
  %v195 = vld [vmem:[%s187 + $0x38] sm:$0xff]
  %v196 = vld [vmem:[%s187 + $0x40] sm:$0xf]
  %v197 = vld [vmem:[%s187 + $0x48] sm:$0xf]
  %v199 = vsel %vm71, %v196, 0
  %v202 = vsel %vm71, %v197, 0
  %204 = vmatprep.subr.mxu0 %v189
  %205 = vmatpush1.msra.mxu0 %v188
  %206 = vmatprep.subr.mxu0 %v191
  %207 = vmatpush1.msra.mxu0 %v190
  %208 = vmatprep.subr.mxu0 %v193
  %209 = vmatpush1.msra.mxu0 %v192
  %210 = vmatprep.subr.mxu0 %v195
  %211 = vmatpush1.msra.mxu0 %v194
  %212 = vmatprep.subr.mxu0 %v202
  %213 = vmatpush1.msra.mxu0 %v199
  %214 = vmatprep.subr.mxu0 0.0
  %215 = vmatpush1.msra.mxu0 0.0
  %216 = vmatprep.subr.mxu0 0.0
  %217 = vmatpush1.msra.mxu0 0.0
  %218 = vmatprep.subr.mxu0 0.0
  %219 = vmatpush1.msra.mxu0 0.0
  %220 = vmatprep.subr.mxu0 0.0
  %221 = vmatpush1.msra.mxu0 0.0
  %222 = vmatprep.subr.mxu0 0.0
  %223 = vmatpush1.msra.mxu0 0.0
  %224 = vmatprep.subr.mxu0 0.0
  %225 = vmatpush1.msra.mxu0 0.0
  %226 = vmatprep.subr.mxu0 0.0
  %227 = vmatpush1.msra.mxu0 0.0
  %228 = vmatprep.subr.mxu0 0.0
  %229 = vmatpush1.msra.mxu0 0.0
  %230 = vmatprep.subr.mxu0 0.0
  %231 = vmatpush1.msra.mxu0 0.0
  %232 = vmatprep.subr.mxu0 0.0
  %233 = vmatpush1.msra.mxu0 0.0
  %234 = vmatprep.subr.mxu0 0.0
  %235 = vmatpush1.msra.mxu0 0.0
  %236 = vmatprep.subr.mxu0 0.0
  %237 = vmatpush1.msra.mxu0 0.0
  %238 = vmatprep.subr.mxu0 0.0
  %239 = vmatpush1.msra.mxu0 0.0
  %240 = vmatprep.subr.mxu0 0.0
  %241 = vmatpush1.msra.mxu0 0.0
  %242 = vmatprep.subr.mxu0 0.0
  %243 = vmatpush1.msra.mxu0 0.0
  %244 = vmatprep.subr.mxu0 0.0
  %245 = vmatpush1.msra.mxu0 0.0
  %246 = vmatprep.subr.mxu0 0.0
  %247 = vmatpush1.msra.mxu0 0.0
  %248 = vmatprep.subr.mxu0 0.0
  %249 = vmatpush1.msra.mxu0 0.0
  %250 = vmatprep.subr.mxu0 0.0
  %251 = vmatpush1.msra.mxu0 0.0
  %252 = vmatprep.subr.mxu0 0.0
  %253 = vmatpush1.msra.mxu0 0.0
  %254 = vmatprep.subr.mxu0 0.0
  %255 = vmatpush1.msra.mxu0 0.0
  %256 = vmatprep.subr.mxu0 0.0
  %257 = vmatpush1.msra.mxu0 0.0
  %258 = vmatprep.subr.mxu0 0.0
  %259 = vmatpush1.msra.mxu0 0.0
  %260 = vmatprep.subr.mxu0 0.0
  %261 = vmatpush1.msra.mxu0 0.0
  %262 = vmatprep.subr.mxu0 0.0
  %263 = vmatpush1.msra.mxu0 0.0
  %264 = vmatprep.subr.mxu0 0.0
  %265 = vmatpush1.msra.mxu0 0.0
  %266 = vmatprep.subr.mxu0 0.0
  %267 = vmatpush1.msra.mxu0 0.0
  %268 = vmatprep.mubr.f32.mxu0 0.0
  %269 = vmatmul.mubr.f32.gmra.mrb[0].mxu0 %v60
  %v270 = vpop.f32.mrb[0].mxu0
  %v271 = vadd.f32 %v41, %v270
  %v272 = vpop.f32.mrb[0].mxu0
  %v273 = vadd.f32 %v41, %v272
  %274 = vmatprep.mubr.f32.mxu0 0.0
  %275 = vmatmul.mubr.f32.gmra.mrb[0].mxu0 %v63
  %v276 = vpop.f32.mrb[0].mxu0
  %v277 = vadd.f32 %v46, %v276
  %v278 = vpop.f32.mrb[0].mxu0
  %v279 = vadd.f32 %v46, %v278
  %280 = vmatprep.mubr.f32.mxu0 0.0
  %281 = vmatmul.mubr.f32.gmra.mrb[0].mxu0 %v66
  %v282 = vpop.f32.mrb[0].mxu0
  %v283 = vadd.f32 %v51, %v282
  %v284 = vpop.f32.mrb[0].mxu0
  %v285 = vadd.f32 %v51, %v284
  %286 = vmatprep.mubr.f32.mxu0 0.0
  %287 = vmatmul.mubr.f32.gmra.mrb[0].mxu0 %v69
  %v288 = vpop.f32.mrb[0].mxu0
  %v289 = vadd.f32 %v56, %v288
  %v290 = vpop.f32.mrb[0].mxu0
  %v291 = vadd.f32 %v56, %v290
  %292 = vdwg.mxu0
  %v293 = vmax.f32 %v271, 0.0
  %v294 = vmax.f32 %v273, 0.0
  %v295 = vmax.f32 %v277, 0.0
  %v296 = vmax.f32 %v279, 0.0
  %v297 = vmax.f32 %v283, 0.0
  %v298 = vmax.f32 %v285, 0.0
  %v299 = vmax.f32 %v289, 0.0
  %v300 = vmax.f32 %v291, 0.0
  %v301 = vadd.f32 %v293, %v294
  %302 = vadd.xlane.f32.xlu0 %v301
  %v303 = vpop.xlane.xlu0 %302
  %v304 = vadd.f32 %v295, %v296
  %305 = vadd.xlane.f32.xlu0 %v304
  %v306 = vpop.xlane.xlu0 %305
  %v307 = vadd.f32 %v297, %v298
  %308 = vadd.xlane.f32.xlu0 %v307
  %v309 = vpop.xlane.xlu0 %308
  %v310 = vadd.f32 %v299, %v300
  %311 = vadd.xlane.f32.xlu0 %v310
  %v312 = vpop.xlane.xlu0 %311
  %vm313 = vcmask 7168
  %v314 = vsel %vm313, %v177, %v303
  %v315 = vsel %vm313, %v180, %v306
  %v316 = vsel %vm313, %v183, %v309
  %v317 = vsel %vm313, %v186, %v312
  %v318 = vld [vmem:[%s3] sm:$0xff]
  %v319 = vld [vmem:[%s3 + $0x8] sm:$0xff]
  %v320 = vld [vmem:[%s3 + $0x10] sm:$0xff]
  %v321 = vld [vmem:[%s3 + $0x18] sm:$0xff]
  %v322 = vld [vmem:[%s3 + $0x20] sm:$0xff]
  %v323 = vld [vmem:[%s3 + $0x28] sm:$0xff]
  %v324 = vld [vmem:[%s3 + $0x30] sm:$0xff]
  %v325 = vld [vmem:[%s3 + $0x38] sm:$0xff]
  %v326 = vld [vmem:[%s3 + $0x40] sm:$0xff]
  %v327 = vld [vmem:[%s3 + $0x48] sm:$0xff]
  %v328 = vld [vmem:[%s3 + $0x50] sm:$0xff]
  %v329 = vld [vmem:[%s3 + $0x58] sm:$0xff]
  %v330 = vld [vmem:[%s3 + $0x60] sm:$0xff]
  %v331 = vld [vmem:[%s3 + $0x68] sm:$0xff]
  %v332 = vld [vmem:[%s3 + $0x70] sm:$0xff]
  %v333 = vld [vmem:[%s3 + $0x78] sm:$0xff]
  %v334 = vld [vmem:[%s4] sm:$0xff]
  %v335 = vld [vmem:[%s4 + $0x8] sm:$0xff]
  %v336 = vld [vmem:[%s4 + $0x10] sm:$0xff]
  %v337 = vld [vmem:[%s4 + $0x18] sm:$0xff]
  %v338 = vld [vmem:[%s4 + $0x20] sm:$0xff]
  %v339 = vld [vmem:[%s4 + $0x28] sm:$0xff]
  %v340 = vld [vmem:[%s4 + $0x30] sm:$0xff]
  %v341 = vld [vmem:[%s4 + $0x38] sm:$0xff]
  %v342 = vld [vmem:[%s4 + $0x40] sm:$0xff]
  %v343 = vld [vmem:[%s4 + $0x48] sm:$0xff]
  %v344 = vld [vmem:[%s4 + $0x50] sm:$0xff]
  %v345 = vld [vmem:[%s4 + $0x58] sm:$0xff]
  %v346 = vld [vmem:[%s4 + $0x60] sm:$0xff]
  %v347 = vld [vmem:[%s4 + $0x68] sm:$0xff]
  %v348 = vld [vmem:[%s4 + $0x70] sm:$0xff]
  %v349 = vld [vmem:[%s4 + $0x78] sm:$0xff]
  %351 = vset.pattern.permute.xlu0 0
  %352 = vperm.xlu0 %351, %v334
  %v353 = vpop.permute.xlu0 %352
  %356 = vset.pattern.permute.xlu0 0
  %357 = vperm.xlu0 %356, %v335
  %v358 = vpop.permute.xlu0 %357
  %361 = vset.pattern.permute.xlu0 0
  %362 = vperm.xlu0 %361, %v336
  %v363 = vpop.permute.xlu0 %362
  %366 = vset.pattern.permute.xlu0 0
  %367 = vperm.xlu0 %366, %v337
  %v368 = vpop.permute.xlu0 %367
  %371 = vset.pattern.permute.xlu0 0
  %372 = vperm.xlu0 %371, %v338
  %v373 = vpop.permute.xlu0 %372
  %376 = vset.pattern.permute.xlu0 0
  %377 = vperm.xlu0 %376, %v339
  %v378 = vpop.permute.xlu0 %377
  %381 = vset.pattern.permute.xlu0 0
  %382 = vperm.xlu0 %381, %v340
  %v383 = vpop.permute.xlu0 %382
  %386 = vset.pattern.permute.xlu0 0
  %387 = vperm.xlu0 %386, %v341
  %v388 = vpop.permute.xlu0 %387
  %391 = vset.pattern.permute.xlu0 0
  %392 = vperm.xlu0 %391, %v342
  %v393 = vpop.permute.xlu0 %392
  %396 = vset.pattern.permute.xlu0 0
  %397 = vperm.xlu0 %396, %v343
  %v398 = vpop.permute.xlu0 %397
  %401 = vset.pattern.permute.xlu0 0
  %402 = vperm.xlu0 %401, %v344
  %v403 = vpop.permute.xlu0 %402
  %406 = vset.pattern.permute.xlu0 0
  %407 = vperm.xlu0 %406, %v345
  %v408 = vpop.permute.xlu0 %407
  %411 = vset.pattern.permute.xlu0 0
  %412 = vperm.xlu0 %411, %v346
  %v413 = vpop.permute.xlu0 %412
  %416 = vset.pattern.permute.xlu0 0
  %417 = vperm.xlu0 %416, %v347
  %v418 = vpop.permute.xlu0 %417
  %421 = vset.pattern.permute.xlu0 0
  %422 = vperm.xlu0 %421, %v348
  %v423 = vpop.permute.xlu0 %422
  %426 = vset.pattern.permute.xlu0 0
  %427 = vperm.xlu0 %426, %v349
  %v428 = vpop.permute.xlu0 %427
  %vm430 = vcmask 261120
  %v432 = vsel %vm430, %v318, 0
  %v435 = vsel %vm430, %v319, 0
  %v438 = vsel %vm430, %v320, 0
  %v441 = vsel %vm430, %v321, 0
  %v444 = vsel %vm430, %v322, 0
  %v447 = vsel %vm430, %v323, 0
  %v450 = vsel %vm430, %v324, 0
  %v453 = vsel %vm430, %v325, 0
  %v456 = vsel %vm430, %v326, 0
  %v459 = vsel %vm430, %v327, 0
  %v462 = vsel %vm430, %v328, 0
  %v465 = vsel %vm430, %v329, 0
  %v468 = vsel %vm430, %v330, 0
  %v471 = vsel %vm430, %v331, 0
  %v474 = vsel %vm430, %v332, 0
  %v477 = vsel %vm430, %v333, 0
  %479 = vmatprep.subr.mxu0 0.0
  %480 = vmatpush1.msra.mxu0 %v314
  %481 = vmatprep.subr.mxu0 0.0
  %482 = vmatpush1.msra.mxu0 %v315
  %483 = vmatprep.subr.mxu0 0.0
  %484 = vmatpush1.msra.mxu0 %v316
  %485 = vmatprep.subr.mxu0 0.0
  %486 = vmatpush1.msra.mxu0 %v317
  %487 = vmatprep.subr.mxu0 0.0
  %488 = vmatpush1.msra.mxu0 0.0
  %489 = vmatprep.subr.mxu0 0.0
  %490 = vmatpush1.msra.mxu0 0.0
  %491 = vmatprep.subr.mxu0 0.0
  %492 = vmatpush1.msra.mxu0 0.0
  %493 = vmatprep.subr.mxu0 0.0
  %494 = vmatpush1.msra.mxu0 0.0
  %495 = vmatprep.subr.mxu0 0.0
  %496 = vmatpush1.msra.mxu0 0.0
  %497 = vmatprep.subr.mxu0 0.0
  %498 = vmatpush1.msra.mxu0 0.0
  %499 = vmatprep.subr.mxu0 0.0
  %500 = vmatpush1.msra.mxu0 0.0
  %501 = vmatprep.subr.mxu0 0.0
  %502 = vmatpush1.msra.mxu0 0.0
  %503 = vmatprep.subr.mxu0 0.0
  %504 = vmatpush1.msra.mxu0 0.0
  %505 = vmatprep.subr.mxu0 0.0
  %506 = vmatpush1.msra.mxu0 0.0
  %507 = vmatprep.subr.mxu0 0.0
  %508 = vmatpush1.msra.mxu0 0.0
  %509 = vmatprep.subr.mxu0 0.0
  %510 = vmatpush1.msra.mxu0 0.0
  %511 = vmatprep.subr.mxu0 0.0
  %512 = vmatpush1.msra.mxu0 0.0
  %513 = vmatprep.subr.mxu0 0.0
  %514 = vmatpush1.msra.mxu0 0.0
  %515 = vmatprep.subr.mxu0 0.0
  %516 = vmatpush1.msra.mxu0 0.0
  %517 = vmatprep.subr.mxu0 0.0
  %518 = vmatpush1.msra.mxu0 0.0
  %519 = vmatprep.subr.mxu0 0.0
  %520 = vmatpush1.msra.mxu0 0.0
  %521 = vmatprep.subr.mxu0 0.0
  %522 = vmatpush1.msra.mxu0 0.0
  %523 = vmatprep.subr.mxu0 0.0
  %524 = vmatpush1.msra.mxu0 0.0
  %525 = vmatprep.subr.mxu0 0.0
  %526 = vmatpush1.msra.mxu0 0.0
  %527 = vmatprep.subr.mxu0 0.0
  %528 = vmatpush1.msra.mxu0 0.0
  %529 = vmatprep.subr.mxu0 0.0
  %530 = vmatpush1.msra.mxu0 0.0
  %531 = vmatprep.subr.mxu0 0.0
  %532 = vmatpush1.msra.mxu0 0.0
  %533 = vmatprep.subr.mxu0 0.0
  %534 = vmatpush1.msra.mxu0 0.0
  %535 = vmatprep.subr.mxu0 0.0
  %536 = vmatpush1.msra.mxu0 0.0
  %537 = vmatprep.subr.mxu0 0.0
  %538 = vmatpush1.msra.mxu0 0.0
  %539 = vmatprep.subr.mxu0 0.0
  %540 = vmatpush1.msra.mxu0 0.0
  %541 = vmatprep.subr.mxu0 0.0
  %542 = vmatpush1.msra.mxu0 0.0
  %543 = vmatprep.mubr.f32.mxu0 0.0
  %544 = vmatmul.mubr.f32.gmra.mrb[0].mxu0 %v432
  %v545 = vpop.f32.mrb[0].mxu0
  %v546 = vadd.f32 %v353, %v545
  %v547 = vpop.f32.mrb[0].mxu0
  %548 = vmatprep.mubr.f32.mxu0 0.0
  %549 = vmatmul.mubr.f32.gmra.mrb[0].mxu0 %v435
  %v550 = vpop.f32.mrb[0].mxu0
  %v551 = vadd.f32 %v358, %v550
  %v552 = vpop.f32.mrb[0].mxu0
  %553 = vmatprep.mubr.f32.mxu0 0.0
  %554 = vmatmul.mubr.f32.gmra.mrb[0].mxu0 %v438
  %v555 = vpop.f32.mrb[0].mxu0
  %v556 = vadd.f32 %v363, %v555
  %v557 = vpop.f32.mrb[0].mxu0
  %558 = vmatprep.mubr.f32.mxu0 0.0
  %559 = vmatmul.mubr.f32.gmra.mrb[0].mxu0 %v441
  %v560 = vpop.f32.mrb[0].mxu0
  %v561 = vadd.f32 %v368, %v560
  %v562 = vpop.f32.mrb[0].mxu0
  %563 = vmatprep.mubr.f32.mxu0 0.0
  %564 = vmatmul.mubr.f32.gmra.mrb[0].mxu0 %v444
  %v565 = vpop.f32.mrb[0].mxu0
  %v566 = vadd.f32 %v373, %v565
  %v567 = vpop.f32.mrb[0].mxu0
  %568 = vmatprep.mubr.f32.mxu0 0.0
  %569 = vmatmul.mubr.f32.gmra.mrb[0].mxu0 %v447
  %v570 = vpop.f32.mrb[0].mxu0
  %v571 = vadd.f32 %v378, %v570
  %v572 = vpop.f32.mrb[0].mxu0
  %573 = vmatprep.mubr.f32.mxu0 0.0
  %574 = vmatmul.mubr.f32.gmra.mrb[0].mxu0 %v450
  %v575 = vpop.f32.mrb[0].mxu0
  %v576 = vadd.f32 %v383, %v575
  %v577 = vpop.f32.mrb[0].mxu0
  %578 = vmatprep.mubr.f32.mxu0 0.0
  %579 = vmatmul.mubr.f32.gmra.mrb[0].mxu0 %v453
  %v580 = vpop.f32.mrb[0].mxu0
  %v581 = vadd.f32 %v388, %v580
  %v582 = vpop.f32.mrb[0].mxu0
  %583 = vmatprep.mubr.f32.mxu0 0.0
  %584 = vmatmul.mubr.f32.gmra.mrb[0].mxu0 %v456
  %v585 = vpop.f32.mrb[0].mxu0
  %v586 = vadd.f32 %v393, %v585
  %v587 = vpop.f32.mrb[0].mxu0
  %588 = vmatprep.mubr.f32.mxu0 0.0
  %589 = vmatmul.mubr.f32.gmra.mrb[0].mxu0 %v459
  %v590 = vpop.f32.mrb[0].mxu0
  %v591 = vadd.f32 %v398, %v590
  %v592 = vpop.f32.mrb[0].mxu0
  %593 = vmatprep.mubr.f32.mxu0 0.0
  %594 = vmatmul.mubr.f32.gmra.mrb[0].mxu0 %v462
  %v595 = vpop.f32.mrb[0].mxu0
  %v596 = vadd.f32 %v403, %v595
  %v597 = vpop.f32.mrb[0].mxu0
  %598 = vmatprep.mubr.f32.mxu0 0.0
  %599 = vmatmul.mubr.f32.gmra.mrb[0].mxu0 %v465
  %v600 = vpop.f32.mrb[0].mxu0
  %v601 = vadd.f32 %v408, %v600
  %v602 = vpop.f32.mrb[0].mxu0
  %603 = vmatprep.mubr.f32.mxu0 0.0
  %604 = vmatmul.mubr.f32.gmra.mrb[0].mxu0 %v468
  %v605 = vpop.f32.mrb[0].mxu0
  %v606 = vadd.f32 %v413, %v605
  %v607 = vpop.f32.mrb[0].mxu0
  %608 = vmatprep.mubr.f32.mxu0 0.0
  %609 = vmatmul.mubr.f32.gmra.mrb[0].mxu0 %v471
  %v610 = vpop.f32.mrb[0].mxu0
  %v611 = vadd.f32 %v418, %v610
  %v612 = vpop.f32.mrb[0].mxu0
  %613 = vmatprep.mubr.f32.mxu0 0.0
  %614 = vmatmul.mubr.f32.gmra.mrb[0].mxu0 %v474
  %v615 = vpop.f32.mrb[0].mxu0
  %v616 = vadd.f32 %v423, %v615
  %v617 = vpop.f32.mrb[0].mxu0
  %618 = vmatprep.mubr.f32.mxu0 0.0
  %619 = vmatmul.mubr.f32.gmra.mrb[0].mxu0 %v477
  %v620 = vpop.f32.mrb[0].mxu0
  %v621 = vadd.f32 %v428, %v620
  %v622 = vpop.f32.mrb[0].mxu0
  %623 = vdwg.mxu0
  %vm624 = vcmask 15360
  %625 = vst.msk [vmem:[%s5] sm:$0xff] %vm624, %v546
  %626 = vst.msk [vmem:[%s5 + $0x8] sm:$0xff] %vm624, %v551
  %627 = vst.msk [vmem:[%s5 + $0x10] sm:$0xff] %vm624, %v556
  %628 = vst.msk [vmem:[%s5 + $0x18] sm:$0xff] %vm624, %v561
  %629 = vst.msk [vmem:[%s5 + $0x20] sm:$0xff] %vm624, %v566
  %630 = vst.msk [vmem:[%s5 + $0x28] sm:$0xff] %vm624, %v571
  %631 = vst.msk [vmem:[%s5 + $0x30] sm:$0xff] %vm624, %v576
  %632 = vst.msk [vmem:[%s5 + $0x38] sm:$0xff] %vm624, %v581
  %633 = vst.msk [vmem:[%s5 + $0x40] sm:$0xff] %vm624, %v586
  %634 = vst.msk [vmem:[%s5 + $0x48] sm:$0xff] %vm624, %v591
  %635 = vst.msk [vmem:[%s5 + $0x50] sm:$0xff] %vm624, %v596
  %636 = vst.msk [vmem:[%s5 + $0x58] sm:$0xff] %vm624, %v601
  %637 = vst.msk [vmem:[%s5 + $0x60] sm:$0xff] %vm624, %v606
  %638 = vst.msk [vmem:[%s5 + $0x68] sm:$0xff] %vm624, %v611
  %639 = vst.msk [vmem:[%s5 + $0x70] sm:$0xff] %vm624, %v616
  %640 = vst.msk [vmem:[%s5 + $0x78] sm:$0xff] %vm624, %v621
  // Predicated region
  $region22: #{brainwrapper_forward.1} parent=0 // pred_check
    _
  $region23: #{brainwrapper_forward.1} parent=0 // pred_check_branch
    %642 = sbr.rel (0) target = $region25
  $region24: #{brainwrapper_forward.1} parent=0 // pred_region
    _
  $region25: #{brainwrapper_forward.1} parent=0 // pred_fallthru
    _
  // Predicated region
  $region26: #{brainwrapper_forward.1} parent=0 // pred_check
    _
  $region27: #{brainwrapper_forward.1} parent=0 // pred_check_branch
    %644 = sbr.rel (0) target = $region29
  $region28: #{brainwrapper_forward.1} parent=0 // pred_region
    _
  $region29: #{brainwrapper_forward.1} parent=0 // pred_fallthru
    _

</llo_original>
